<compile_context>
chip_gen: v5e
topology: v5e:2x2
jax: 0.10.0
libtpu: 0.0.40
codegen_flags: <defaults>
</compile_context>

<pallas_src>
import jax
import jax.numpy as jnp
from jax.experimental import pallas as pl
from jax.experimental.pallas import tpu as pltpu

SCALE = 6.0                              # PyTorch module default
_TARGET_BLOCK_BYTES = 2 * 1024 * 1024    # ~2 MiB per VMEM buffer (safe on v5e/v6e/v7x)
_LANE = 128


def _pick_lane_width(n):
    """Widest lane-dense last dim (multiple of 128) that divides n, else 128+pad."""
    for w in (8192, 4096, 2048, 1024, 512, 256, 128):
        if n % w == 0:
            return w, False
    return _LANE, True


def scaled_tanh(x, scale=SCALE):
    """Applies scale * tanh(x) elementwise via a Pallas TPU kernel."""
    orig_shape = x.shape
    orig_dtype = x.dtype
    n = x.size
    if n == 0:
        return x

    x_flat = jnp.ravel(x)

    lane_w, needs_pad = _pick_lane_width(n)
    if needs_pad:
        # Pad only up to a multiple of 128 (at most 127 extra elements).
        padded = pl.cdiv(n, lane_w) * lane_w
        x_flat = jnp.pad(x_flat, (0, padded - n))
    else:
        padded = n

    rows = padded // lane_w
    x2d = x_flat.reshape(rows, lane_w)

    # Row tile sized for ~2 MiB per buffer; multiple of 8 (sublane tiling).
    bytes_per_elem = jnp.dtype(orig_dtype).itemsize
    target_rows = max(8, (_TARGET_BLOCK_BYTES // (lane_w * bytes_per_elem)) // 8 * 8)
    if rows <= target_rows:
        row_tile = rows                      # full dim -> always a legal block dim
        grid = (1,)
    else:
        row_tile = target_rows               # multiple of 8; partial last block is masked
        grid = (pl.cdiv(rows, row_tile),)

    def kernel(x_ref, o_ref):
        xv = x_ref[...].astype(jnp.float32)
        o_ref[...] = (scale * jnp.tanh(xv)).astype(o_ref.dtype)

    out2d = pl.pallas_call(
        kernel,
        out_shape=jax.ShapeDtypeStruct((rows, lane_w), orig_dtype),
        grid_spec=pltpu.PrefetchScalarGridSpec(
            num_scalar_prefetch=0,
            grid=grid,
            in_specs=[pl.BlockSpec((row_tile, lane_w), lambda i: (i, 0))],
            out_specs=pl.BlockSpec((row_tile, lane_w), lambda i: (i, 0)),
        ),
        compiler_params=pltpu.CompilerParams(
            dimension_semantics=("parallel",)),
    )(x2d)

    out_flat = out2d.reshape(padded)
    if needs_pad:
        out_flat = out_flat[:n]
    return out_flat.reshape(orig_shape)


if __name__ == "__main__":
    key = jax.random.PRNGKey(0)

    # Primary check: NCHW-like input, matches the module's typical use.
    x = jax.random.normal(key, (2, 4, 16, 16), dtype=jnp.float32)
    y = scaled_tanh(x)
    jax.block_until_ready(y)
    y_ref = SCALE * jnp.tanh(x)
    assert y.shape == x.shape and y.dtype == x.dtype
    assert jnp.max(jnp.abs(y - y_ref)) < 1e-5

    # Secondary check: size not a multiple of 128 (exercises the padded path).
    x2 = jax.random.normal(jax.random.PRNGKey(1), (3, 5, 7), dtype=jnp.float32)
    y2 = scaled_tanh(x2)
    jax.block_until_ready(y2)
    assert jnp.max(jnp.abs(y2 - SCALE * jnp.tanh(x2))) < 1e-5

    print("KERNEL_OK")
</pallas_src>

<mosaic_0001>
module attributes {stable_mosaic.version = 11 : i64} {
  func.func @kernel(%arg0: i32, %arg1: memref<1x2048xf32, #tpu.memory_space<vmem>>, %arg2: memref<1x2048xf32, #tpu.memory_space<vmem>>) attributes {dimension_semantics = [#tpu.dimension_semantics<parallel>], iteration_bounds = array<i64: 1>, scalar_prefetch = 0 : i64, scratch_operands = 0 : i64, tpu.core_type = #tpu.core_type<tc>, window_params = [{transform_indices = @transform_0, window_bounds = array<i64: 1, 2048>}, {transform_indices = @transform_1, window_bounds = array<i64: 1, 2048>}]} {
    %c0 = arith.constant 0 : index
    %c0_0 = arith.constant 0 : index
    %0 = vector.load %arg1[%c0, %c0_0] : memref<1x2048xf32, #tpu.memory_space<vmem>>, vector<1x2048xf32>
    %1 = math.tanh %0 : vector<1x2048xf32>
    %cst = arith.constant 6.000000e+00 : f32
    %2 = vector.broadcast %cst : f32 to vector<1x2048xf32>
    %3 = arith.mulf %2, %1 : vector<1x2048xf32>
    %c0_1 = arith.constant 0 : index
    %c0_2 = arith.constant 0 : index
    %4 = vector.load %arg2[%c0_1, %c0_2] : memref<1x2048xf32, #tpu.memory_space<vmem>>, vector<1x2048xf32>
    tpu.vector_store %arg2[%c0_1, %c0_2], %3 {strides = array<i32>} : memref<1x2048xf32, #tpu.memory_space<vmem>>, vector<1x2048xf32>,
    return
  }
  func.func @transform_0(%arg0: i32) -> (i32, i32) {
    %c0_i32 = arith.constant 0 : i32
    %c0_i32_0 = arith.constant 0 : i32
    return %arg0, %c0_i32 : i32, i32
  }
  func.func @transform_1(%arg0: i32) -> (i32, i32) {
    %c0_i32 = arith.constant 0 : i32
    %c0_i32_0 = arith.constant 0 : i32
    return %arg0, %c0_i32 : i32, i32
  }
}

</mosaic_0001>

<llo_original>
// kernel: tpu_custom_call.1
$region0: #{tpu_custom_call.1}
  #allocation0 [shape = 'u32[]', space=smem, size = 0x4, offset = 0x4, fixed_abs, tag = 'smem constant byte address 0x4 - core index']
  #allocation1 [shape = 'u32[72,128]{1,0:T(1,128)}', space=vmem, size = 0x9000, scoped, tag = 'internal scratch']
  %s0 = inlined_call_operand.hbm [shape: f32[1,2048], index: 0, kind: input, shape index: {}]
  %s1 = inlined_call_operand.hbm [shape: f32[1,2048], index: 1, kind: output, shape index: {}]
  %s2 = sld [smem:[#allocation0]]
  $region18: #{tpu_custom_call.1} parent=0
    _
  %s4 = ssub.s32 1, %s2
  %s5 = scalar_select 0, %s4, %s2
  $region1: #{tpu_custom_call.1} parent=0
    #allocation2 [shape = 'u8[8192]{0}', space=vmem, size = 0x2000, scoped, tag = 'input window, operand 0, single buffered']
    #allocation3 [shape = 's32[1]{0}', space=sflag, size = 0x4, scoped, tag = 'scoped memory for tpu_custom_call.1']
    #allocation4 [shape = 's32[1]{0}', space=sflag, size = 0x4, scoped, tag = 'scoped memory for tpu_custom_call.1']
    #allocation5 [shape = 'u8[8192]{0}', space=vmem, size = 0x2000, scoped, tag = 'output window, operand 0, single buffered']
    %6 = vsyncpa [#allocation3], 0
    %7 = vsyncpa [#allocation4], 0
    // Predicated region
    $region2: #{tpu_custom_call.1} parent=1 // pred_check
      _
    $region3: #{tpu_custom_call.1} parent=1 // pred_check_branch
      %9 = sbr.rel (0) target = $region5
    $region4: #{tpu_custom_call.1} parent=1 // pred_region
      %11 = vsyncadd [#allocation3], 0
      %s13 = sshll.u32 %s0, 4
      %s14 = int_to_ptr.hbm [resolvable:$true] %s13
      %s15 = sshll.u32 [#allocation2], 4
      %s16 = int_to_ptr.vmem [resolvable:$true] %s15
      %18 = dma.hbm_to_vmem [thread:$0]  %s14, 256, %s16, [#allocation3]
    $region5: #{tpu_custom_call.1} parent=1 // pred_fallthru
      _
    // Predicated region
    $region6: #{tpu_custom_call.1} parent=1 // pred_check
      _
    $region7: #{tpu_custom_call.1} parent=1 // pred_check_branch
      %20 = sbr.rel (0) target = $region9
    $region8: #{tpu_custom_call.1} parent=1 // pred_region
      %22 = dma.done [#allocation3], 256
    $region9: #{tpu_custom_call.1} parent=1 // pred_fallthru
      _
    %v23 = vld [vmem:[#allocation2] sm:$0xff]
    %v24 = vld [vmem:[#allocation2 + $0x8] sm:$0xff]
    %v25 = vtanh.pop %v23
    %v26 = vtanh.pop %v24
    %v27 = vmul.f32 %v25, 6.0
    %v28 = vmul.f32 %v26, 6.0
    %29 = vst [vmem:[#allocation5] sm:$0xff] %v27
    %30 = vst [vmem:[#allocation5 + $0x8] sm:$0xff] %v28
    // Predicated region
    $region10: #{tpu_custom_call.1} parent=1 // pred_check
      _
    $region11: #{tpu_custom_call.1} parent=1 // pred_check_branch
      %32 = sbr.rel (0) target = $region13
    $region12: #{tpu_custom_call.1} parent=1 // pred_region
      %34 = vsyncadd [#allocation4], 0
      %s36 = sshll.u32 [#allocation5], 4
      %s37 = int_to_ptr.vmem [resolvable:$true] %s36
      %s38 = sshll.u32 %s1, 4
      %s39 = int_to_ptr.hbm [resolvable:$true] %s38
      %41 = dma.vmem_to_hbm [thread:$0]  %s37, 256, %s39, [#allocation4]
    $region13: #{tpu_custom_call.1} parent=1 // pred_fallthru
      _
    // Predicated region
    $region14: #{tpu_custom_call.1} parent=1 // pred_check
      _
    $region15: #{tpu_custom_call.1} parent=1 // pred_check_branch
      %43 = sbr.rel (0) target = $region17
    $region16: #{tpu_custom_call.1} parent=1 // pred_region
      %45 = dma.done [#allocation4], 256
    $region17: #{tpu_custom_call.1} parent=1 // pred_fallthru
      _
    %46 = vsyncpa [#allocation3], 1
    %47 = vsyncpa [#allocation4], 1

</llo_original>
